<compile_context>
chip_gen: v7x
topology: tpu7x:2x2x1
jax: 0.10.0
libtpu: 0.0.40
codegen_flags: <defaults>
</compile_context>

<pallas_src>
import functools

import jax
import jax.numpy as jnp
from jax import lax
from jax.experimental import pallas as pl
from jax.experimental.pallas import tpu as pltpu


def _round_up(x, m):
    return ((x + m - 1) // m) * m


def _head_kernel(feat_ref, feat2_ref,
                 wd_ref, bd_ref,
                 wdec_ref, wf_ref, bout_ref,
                 o_ref, *, eps):
    # ---- dense: Linear(H, H); bf16 MXU inputs, f32 accumulation ----
    a = feat_ref[...].astype(jnp.bfloat16)
    x = jnp.dot(a, wd_ref[...], preferred_element_type=jnp.float32)
    x = x + bd_ref[...]

    # ---- gelu (exact, erf-based, matches torch.nn.functional.gelu default) ----
    x = 0.5 * x * (1.0 + lax.erf(x * 0.7071067811865476))

    # ---- LayerNorm over the real hidden dim (two-pass, f32).  The affine
    #      (gamma, beta) is folded into wdec'/b_out' in the wrapper. ----
    mean = jnp.mean(x, axis=-1, keepdims=True)
    d = x - mean
    var = jnp.mean(d * d, axis=-1, keepdims=True)
    xn = (d * lax.rsqrt(var + eps)).astype(jnp.bfloat16)

    # ---- decoder(H, O) + decoder_feat(F, O), single folded bias ----
    out = jnp.dot(xn, wdec_ref[...], preferred_element_type=jnp.float32)
    out = out + jnp.dot(feat2_ref[...].astype(jnp.bfloat16), wf_ref[...],
                        preferred_element_type=jnp.float32)
    out = out + bout_ref[...]

    o_ref[...] = out.astype(o_ref.dtype)


def action_recognition_head(features, features_2, params, *, eps=1e-12,
                            tile_n=1024):
    """features: [N, H], features_2: [N, F] (f32 or bf16). Returns [N, out_size] f32."""
    N, H = features.shape
    F_dim = features_2.shape[1]
    O = params["w_dec"].shape[1]
    Op = _round_up(O, 128)            # lane-dense output stores

    f32, bf16 = jnp.float32, jnp.bfloat16

    # ---- parameter prep (tiny, one-time; activations are NOT copied) ----
    wd = params["w_dense"].astype(bf16)                       # [H, H]
    bd = params["b_dense"].reshape(1, H).astype(f32)          # [1, H]
    gamma = params["gamma"].reshape(H).astype(f32)
    beta = params["beta"].reshape(H).astype(f32)
    w_dec = params["w_dec"].astype(f32)                       # [H, O]
    w_feat = params["w_feat"].astype(f32)                     # [F, O]

    # Fold LayerNorm affine + both decoder biases (exact up to fp reassociation).
    wdec = gamma[:, None] * w_dec
    b_out = (params["b_dec"].reshape(1, O).astype(f32)
             + params["b_feat"].reshape(1, O).astype(f32)
             + beta[None, :] @ w_dec)
    if Op != O:
        wdec = jnp.pad(wdec, ((0, 0), (0, Op - O)))
        w_feat = jnp.pad(w_feat, ((0, 0), (0, Op - O)))
        b_out = jnp.pad(b_out, ((0, 0), (0, Op - O)))
    wdec = wdec.astype(bf16)
    w_feat = w_feat.astype(bf16)

    # ---- row tiling: no row padding; partial last block is masked by Pallas ----
    if N > 16:
        # >= 2 grid steps so the "parallel" row axis shards across 2 TCs (v7x).
        tn = min(tile_n, _round_up(pl.cdiv(N, 2), 16))
        tn = max(16, (tn // 16) * 16)     # sublane alignment (bf16-safe)
        tn = min(tn, N)
    else:
        tn = N                             # full-extent block

    act_bpe = jnp.dtype(features.dtype).itemsize
    act2_bpe = jnp.dtype(features_2.dtype).itemsize
    weight_bytes = (H * H + H * Op + F_dim * Op) * 2 + (H + Op) * 4

    def footprint(t):
        tiles = t * H * act_bpe + t * F_dim * act2_bpe + t * Op * 4
        return 2 * tiles + 2 * weight_bytes + (2 << 20)   # conservative margin

    while tn > 256 and footprint(tn) > (56 << 20):
        tn = max(256, (tn // 2 // 16) * 16)
    num_blocks = pl.cdiv(N, tn)

    vmem_limit = int(min(max(footprint(tn), 32 << 20), 64 << 20))

    cost = pl.CostEstimate(
        flops=2 * N * (H * H + H * Op + F_dim * Op),
        transcendentals=N * H,
        bytes_accessed=N * (H * act_bpe + F_dim * act2_bpe + Op * 4) + weight_bytes,
    )

    kernel = functools.partial(_head_kernel, eps=float(eps))

    def build(pinned_mode):
        def row(cols):
            return pl.BlockSpec((tn, cols), lambda i: (i, 0))

        def pinned(shape):
            if pinned_mode is None:
                return pl.BlockSpec(shape, lambda i: (0, 0))
            return pl.BlockSpec(shape, lambda i: (0, 0), pipeline_mode=pinned_mode)

        return pl.pallas_call(
            kernel,
            out_shape=jax.ShapeDtypeStruct((N, Op), jnp.float32),
            grid=(num_blocks,),
            in_specs=[
                row(H),                # features tile        [tn, H]
                row(F_dim),            # features_2 tile      [tn, F]
                pinned((H, H)),        # w_dense   (resident, bf16)
                pinned((1, H)),        # b_dense   (f32)
                pinned((H, Op)),       # gamma-folded w_dec (bf16)
                pinned((F_dim, Op)),   # w_feat    (bf16)
                pinned((1, Op)),       # folded bias (f32)
            ],
            out_specs=row(Op),
            compiler_params=pltpu.CompilerParams(
                dimension_semantics=("parallel",),
                vmem_limit_bytes=vmem_limit),
            cost_estimate=cost,
        )

    args = (features, features_2, wd, bd, wdec, w_feat, b_out)
    try:
        out = build(pl.Buffered(1))(*args)     # single-buffer the resident weights
    except Exception:
        out = build(None)(*args)               # fallback: default buffering

    if Op != O:
        out = out[:, :O]
    return out


def _reference(features, features_2, params, eps=1e-12):
    f32 = jnp.float32
    x = features.astype(f32) @ params["w_dense"] + params["b_dense"]
    x = 0.5 * x * (1.0 + lax.erf(x / jnp.sqrt(2.0)))
    mean = jnp.mean(x, axis=-1, keepdims=True)
    var = jnp.mean((x - mean) ** 2, axis=-1, keepdims=True)
    x = (x - mean) / jnp.sqrt(var + eps)
    x = x * params["gamma"] + params["beta"]
    out = x @ params["w_dec"] + params["b_dec"]
    out = out + features_2.astype(f32) @ params["w_feat"] + params["b_feat"]
    return out


if __name__ == "__main__":
    # Small config consistent with the module:
    B, S = 2, 8           # batch, sequence
    H = 32                # config.hidden_size
    OUT = 16              # out_size
    FEAT = 24             # feat_dim (concat_feature=True)
    EPS = 1e-12           # config.layer_norm_eps

    key = jax.random.PRNGKey(0)
    ks = jax.random.split(key, 8)

    # Deterministic synthetic parameters (stored as [in, out]).
    params = {
        "w_dense": jax.random.normal(ks[0], (H, H), jnp.float32) * 0.05,
        "b_dense": jax.random.normal(ks[1], (1, H), jnp.float32) * 0.05,
        "gamma":   jnp.ones((1, H), jnp.float32),
        "beta":    jnp.zeros((1, H), jnp.float32),
        "w_dec":   jax.random.normal(ks[2], (H, OUT), jnp.float32) * 0.05,
        "b_dec":   jax.random.normal(ks[3], (1, OUT), jnp.float32) * 0.05,
        "w_feat":  jax.random.normal(ks[4], (FEAT, OUT), jnp.float32) * 0.05,
        "b_feat":  jax.random.normal(ks[5], (1, OUT), jnp.float32) * 0.05,
    }

    # Inputs: features [B, S, H] -> flattened [B*S, H]; features_2 [B*S, FEAT].
    # Cast to bf16 once, representing an upstream bf16 activation pipeline.
    features = (jax.random.normal(ks[6], (B, S, H), jnp.float32)
                .reshape(B * S, H).astype(jnp.bfloat16))
    features_2 = jax.random.normal(ks[7], (B * S, FEAT),
                                   jnp.float32).astype(jnp.bfloat16)

    out = action_recognition_head(features, features_2, params, eps=EPS)
    out = jax.block_until_ready(out)

    ref = _reference(features, features_2, params, eps=EPS)
    assert out.shape == (B * S, OUT)
    # bf16 weights / bf16 LN->decoder cast => compare at bf16-level tolerance.
    assert jnp.allclose(out, ref, atol=2e-2, rtol=2e-2), "mismatch vs JAX reference"

    print("KERNEL_OK")
</pallas_src>

<mosaic_0001>
module attributes {stable_mosaic.version = 11 : i64} {
  func.func @_head_kernel(%arg0: i32, %arg1: memref<16x32xbf16, #tpu.memory_space<vmem>>, %arg2: memref<16x24xbf16, #tpu.memory_space<vmem>>, %arg3: memref<32x32xbf16, #tpu.memory_space<vmem>>, %arg4: memref<1x32xf32, #tpu.memory_space<vmem>>, %arg5: memref<32x128xbf16, #tpu.memory_space<vmem>>, %arg6: memref<24x128xbf16, #tpu.memory_space<vmem>>, %arg7: memref<1x128xf32, #tpu.memory_space<vmem>>, %arg8: memref<16x128xf32, #tpu.memory_space<vmem>>) attributes {dimension_semantics = [#tpu.dimension_semantics<parallel>], iteration_bounds = array<i64: 1>, scalar_prefetch = 0 : i64, scratch_operands = 0 : i64, tpu.core_type = #tpu.core_type<tc>, window_params = [{transform_indices = @transform_0, window_bounds = array<i64: 16, 32>}, {transform_indices = @transform_1, window_bounds = array<i64: 16, 24>}, {pipeline_mode = #tpu.pipeline_mode<synchronous>, transform_indices = @transform_2, window_bounds = array<i64: 32, 32>}, {pipeline_mode = #tpu.pipeline_mode<synchronous>, transform_indices = @transform_3, window_bounds = array<i64: 1, 32>}, {pipeline_mode = #tpu.pipeline_mode<synchronous>, transform_indices = @transform_4, window_bounds = array<i64: 32, 128>}, {pipeline_mode = #tpu.pipeline_mode<synchronous>, transform_indices = @transform_5, window_bounds = array<i64: 24, 128>}, {pipeline_mode = #tpu.pipeline_mode<synchronous>, transform_indices = @transform_6, window_bounds = array<i64: 1, 128>}, {transform_indices = @transform_7, window_bounds = array<i64: 16, 128>}]} {
    %c0 = arith.constant 0 : index
    %c0_0 = arith.constant 0 : index
    %0 = vector.load %arg1[%c0, %c0_0] : memref<16x32xbf16, #tpu.memory_space<vmem>>, vector<16x32xbf16>
    %c0_1 = arith.constant 0 : index
    %c0_2 = arith.constant 0 : index
    %1 = vector.load %arg3[%c0_1, %c0_2] : memref<32x32xbf16, #tpu.memory_space<vmem>>, vector<32x32xbf16>
    %cst = arith.constant dense<0.000000e+00> : vector<16x32xf32>
    %2 = tpu.matmul %0, %1, %cst {dimension_numbers = #tpu.dot_dimension_numbers<[1], [0], [0], [1], [0, 0, 1, 1], [], []>} : vector<16x32xbf16>, vector<32x32xbf16>, vector<16x32xf32> -> vector<16x32xf32>
    %c0_3 = arith.constant 0 : index
    %c0_4 = arith.constant 0 : index
    %3 = vector.load %arg4[%c0_3, %c0_4] : memref<1x32xf32, #tpu.memory_space<vmem>>, vector<1x32xf32>
    %4 = vector.broadcast %3 : vector<1x32xf32> to vector<16x32xf32>
    %5 = arith.addf %2, %4 : vector<16x32xf32>
    %cst_5 = arith.constant 5.000000e-01 : f32
    %6 = vector.broadcast %cst_5 : f32 to vector<16x32xf32>
    %7 = arith.mulf %6, %5 : vector<16x32xf32>
    %cst_6 = arith.constant 0.707106769 : f32
    %8 = vector.broadcast %cst_6 : f32 to vector<16x32xf32>
    %9 = arith.mulf %5, %8 : vector<16x32xf32>
    %10 = math.erf %9 : vector<16x32xf32>
    %cst_7 = arith.constant 1.000000e+00 : f32
    %11 = vector.broadcast %cst_7 : f32 to vector<16x32xf32>
    %12 = arith.addf %11, %10 : vector<16x32xf32>
    %13 = arith.mulf %7, %12 : vector<16x32xf32>
    %cst_8 = arith.constant dense<0.000000e+00> : vector<16xf32>
    %14 = vector.multi_reduction <add>, %13, %cst_8 [1] : vector<16x32xf32> to vector<16xf32>
    %15 = vector.shape_cast %14 : vector<16xf32> to vector<16x1xf32>
    %cst_9 = arith.constant 3.200000e+01 : f32
    %16 = vector.broadcast %cst_9 : f32 to vector<16x1xf32>
    %17 = arith.divf %15, %16 : vector<16x1xf32>
    %18 = vector.broadcast %17 : vector<16x1xf32> to vector<16x32xf32>
    %19 = arith.subf %13, %18 : vector<16x32xf32>
    %20 = arith.mulf %19, %19 : vector<16x32xf32>
    %cst_10 = arith.constant dense<0.000000e+00> : vector<16xf32>
    %21 = vector.multi_reduction <add>, %20, %cst_10 [1] : vector<16x32xf32> to vector<16xf32>
    %22 = vector.shape_cast %21 : vector<16xf32> to vector<16x1xf32>
    %cst_11 = arith.constant 3.200000e+01 : f32
    %23 = vector.broadcast %cst_11 : f32 to vector<16x1xf32>
    %24 = arith.divf %22, %23 : vector<16x1xf32>
    %cst_12 = arith.constant 9.99999996E-13 : f32
    %25 = vector.broadcast %cst_12 : f32 to vector<16x1xf32>
    %26 = arith.addf %24, %25 : vector<16x1xf32>
    %27 = math.rsqrt %26 : vector<16x1xf32>
    %28 = vector.broadcast %27 : vector<16x1xf32> to vector<16x32xf32>
    %29 = arith.mulf %19, %28 : vector<16x32xf32>
    %30 = arith.truncf %29 : vector<16x32xf32> to vector<16x32xbf16>
    %c0_13 = arith.constant 0 : index
    %c0_14 = arith.constant 0 : index
    %31 = vector.load %arg5[%c0_13, %c0_14] : memref<32x128xbf16, #tpu.memory_space<vmem>>, vector<32x128xbf16>
    %cst_15 = arith.constant dense<0.000000e+00> : vector<16x128xf32>
    %32 = tpu.matmul %30, %31, %cst_15 {dimension_numbers = #tpu.dot_dimension_numbers<[1], [0], [0], [1], [0, 0, 1, 1], [], []>} : vector<16x32xbf16>, vector<32x128xbf16>, vector<16x128xf32> -> vector<16x128xf32>
    %c0_16 = arith.constant 0 : index
    %c0_17 = arith.constant 0 : index
    %33 = vector.load %arg2[%c0_16, %c0_17] : memref<16x24xbf16, #tpu.memory_space<vmem>>, vector<16x24xbf16>
    %c0_18 = arith.constant 0 : index
    %c0_19 = arith.constant 0 : index
    %34 = vector.load %arg6[%c0_18, %c0_19] : memref<24x128xbf16, #tpu.memory_space<vmem>>, vector<24x128xbf16>
    %cst_20 = arith.constant dense<0.000000e+00> : vector<16x128xf32>
    %35 = tpu.matmul %33, %34, %cst_20 {dimension_numbers = #tpu.dot_dimension_numbers<[1], [0], [0], [1], [0, 0, 1, 1], [], []>} : vector<16x24xbf16>, vector<24x128xbf16>, vector<16x128xf32> -> vector<16x128xf32>
    %36 = arith.addf %32, %35 : vector<16x128xf32>
    %c0_21 = arith.constant 0 : index
    %c0_22 = arith.constant 0 : index
    %37 = vector.load %arg7[%c0_21, %c0_22] : memref<1x128xf32, #tpu.memory_space<vmem>>, vector<1x128xf32>
    %38 = vector.broadcast %37 : vector<1x128xf32> to vector<16x128xf32>
    %39 = arith.addf %36, %38 : vector<16x128xf32>
    %c0_23 = arith.constant 0 : index
    %c0_24 = arith.constant 0 : index
    %40 = vector.load %arg8[%c0_23, %c0_24] : memref<16x128xf32, #tpu.memory_space<vmem>>, vector<16x128xf32>
    tpu.vector_store %arg8[%c0_23, %c0_24], %39 {strides = array<i32>} : memref<16x128xf32, #tpu.memory_space<vmem>>, vector<16x128xf32>,
    return
  }
  func.func @transform_0(%arg0: i32) -> (i32, i32) {
    %c0_i32 = arith.constant 0 : i32
    %c0_i32_0 = arith.constant 0 : i32
    return %arg0, %c0_i32 : i32, i32
  }
  func.func @transform_1(%arg0: i32) -> (i32, i32) {
    %c0_i32 = arith.constant 0 : i32
    %c0_i32_0 = arith.constant 0 : i32
    return %arg0, %c0_i32 : i32, i32
  }
  func.func @transform_2(%arg0: i32) -> (i32, i32) {
    %c0_i32 = arith.constant 0 : i32
    %c0_i32_0 = arith.constant 0 : i32
    %c0_i32_1 = arith.constant 0 : i32
    return %c0_i32, %c0_i32_0 : i32, i32
  }
  func.func @transform_3(%arg0: i32) -> (i32, i32) {
    %c0_i32 = arith.constant 0 : i32
    %c0_i32_0 = arith.constant 0 : i32
    %c0_i32_1 = arith.constant 0 : i32
    return %c0_i32, %c0_i32_0 : i32, i32
  }
  func.func @transform_4(%arg0: i32) -> (i32, i32) {
    %c0_i32 = arith.constant 0 : i32
    %c0_i32_0 = arith.constant 0 : i32
    %c0_i32_1 = arith.constant 0 : i32
    return %c0_i32, %c0_i32_0 : i32, i32
  }
  func.func @transform_5(%arg0: i32) -> (i32, i32) {
    %c0_i32 = arith.constant 0 : i32
    %c0_i32_0 = arith.constant 0 : i32
    %c0_i32_1 = arith.constant 0 : i32
    return %c0_i32, %c0_i32_0 : i32, i32
  }
  func.func @transform_6(%arg0: i32) -> (i32, i32) {
    %c0_i32 = arith.constant 0 : i32
    %c0_i32_0 = arith.constant 0 : i32
    %c0_i32_1 = arith.constant 0 : i32
    return %c0_i32, %c0_i32_0 : i32, i32
  }
  func.func @transform_7(%arg0: i32) -> (i32, i32) {
    %c0_i32 = arith.constant 0 : i32
    %c0_i32_0 = arith.constant 0 : i32
    return %arg0, %c0_i32 : i32, i32
  }
}

module attributes {stable_mosaic.version = 11 : i64} {
  func.func @_head_kernel(%arg0: i32, %arg1: memref<16x32xbf16, #tpu.memory_space<vmem>>, %arg2: memref<16x24xbf16, #tpu.memory_space<vmem>>, %arg3: memref<32x32xbf16, #tpu.memory_space<vmem>>, %arg4: memref<1x32xf32, #tpu.memory_space<vmem>>, %arg5: memref<32x128xbf16, #tpu.memory_space<vmem>>, %arg6: memref<24x128xbf16, #tpu.memory_space<vmem>>, %arg7: memref<1x128xf32, #tpu.memory_space<vmem>>, %arg8: memref<16x128xf32, #tpu.memory_space<vmem>>) attributes {dimension_semantics = [#tpu.dimension_semantics<parallel>], iteration_bounds = array<i64: 1>, scalar_prefetch = 0 : i64, scratch_operands = 0 : i64, tpu.core_type = #tpu.core_type<tc>, window_params = [{transform_indices = @transform_0, window_bounds = array<i64: 16, 32>}, {transform_indices = @transform_1, window_bounds = array<i64: 16, 24>}, {pipeline_mode = #tpu.pipeline_mode<synchronous>, transform_indices = @transform_2, window_bounds = array<i64: 32, 32>}, {pipeline_mode = #tpu.pipeline_mode<synchronous>, transform_indices = @transform_3, window_bounds = array<i64: 1, 32>}, {pipeline_mode = #tpu.pipeline_mode<synchronous>, transform_indices = @transform_4, window_bounds = array<i64: 32, 128>}, {pipeline_mode = #tpu.pipeline_mode<synchronous>, transform_indices = @transform_5, window_bounds = array<i64: 24, 128>}, {pipeline_mode = #tpu.pipeline_mode<synchronous>, transform_indices = @transform_6, window_bounds = array<i64: 1, 128>}, {transform_indices = @transform_7, window_bounds = array<i64: 16, 128>}]} {
    %c0 = arith.constant 0 : index
    %c0_0 = arith.constant 0 : index
    %0 = vector.load %arg1[%c0, %c0_0] : memref<16x32xbf16, #tpu.memory_space<vmem>>, vector<16x32xbf16>
    %c0_1 = arith.constant 0 : index
    %c0_2 = arith.constant 0 : index
    %1 = vector.load %arg3[%c0_1, %c0_2] : memref<32x32xbf16, #tpu.memory_space<vmem>>, vector<32x32xbf16>
    %cst = arith.constant dense<0.000000e+00> : vector<16x32xf32>
    %2 = tpu.matmul %0, %1, %cst {dimension_numbers = #tpu.dot_dimension_numbers<[1], [0], [0], [1], [0, 0, 1, 1], [], []>} : vector<16x32xbf16>, vector<32x32xbf16>, vector<16x32xf32> -> vector<16x32xf32>
    %c0_3 = arith.constant 0 : index
    %c0_4 = arith.constant 0 : index
    %3 = vector.load %arg4[%c0_3, %c0_4] : memref<1x32xf32, #tpu.memory_space<vmem>>, vector<1x32xf32>
    %4 = vector.broadcast %3 : vector<1x32xf32> to vector<16x32xf32>
    %5 = arith.addf %2, %4 : vector<16x32xf32>
    %cst_5 = arith.constant 5.000000e-01 : f32
    %6 = vector.broadcast %cst_5 : f32 to vector<16x32xf32>
    %7 = arith.mulf %6, %5 : vector<16x32xf32>
    %cst_6 = arith.constant 0.707106769 : f32
    %8 = vector.broadcast %cst_6 : f32 to vector<16x32xf32>
    %9 = arith.mulf %5, %8 : vector<16x32xf32>
    %10 = math.erf %9 : vector<16x32xf32>
    %cst_7 = arith.constant 1.000000e+00 : f32
    %11 = vector.broadcast %cst_7 : f32 to vector<16x32xf32>
    %12 = arith.addf %11, %10 : vector<16x32xf32>
    %13 = arith.mulf %7, %12 : vector<16x32xf32>
    %cst_8 = arith.constant dense<0.000000e+00> : vector<16xf32>
    %14 = vector.multi_reduction <add>, %13, %cst_8 [1] : vector<16x32xf32> to vector<16xf32>
    %15 = vector.shape_cast %14 : vector<16xf32> to vector<16x1xf32>
    %cst_9 = arith.constant 3.200000e+01 : f32
    %16 = vector.broadcast %cst_9 : f32 to vector<16x1xf32>
    %17 = arith.divf %15, %16 : vector<16x1xf32>
    %18 = vector.broadcast %17 : vector<16x1xf32> to vector<16x32xf32>
    %19 = arith.subf %13, %18 : vector<16x32xf32>
    %20 = arith.mulf %19, %19 : vector<16x32xf32>
    %cst_10 = arith.constant dense<0.000000e+00> : vector<16xf32>
    %21 = vector.multi_reduction <add>, %20, %cst_10 [1] : vector<16x32xf32> to vector<16xf32>
    %22 = vector.shape_cast %21 : vector<16xf32> to vector<16x1xf32>
    %cst_11 = arith.constant 3.200000e+01 : f32
    %23 = vector.broadcast %cst_11 : f32 to vector<16x1xf32>
    %24 = arith.divf %22, %23 : vector<16x1xf32>
    %cst_12 = arith.constant 9.99999996E-13 : f32
    %25 = vector.broadcast %cst_12 : f32 to vector<16x1xf32>
    %26 = arith.addf %24, %25 : vector<16x1xf32>
    %27 = math.rsqrt %26 : vector<16x1xf32>
    %28 = vector.broadcast %27 : vector<16x1xf32> to vector<16x32xf32>
    %29 = arith.mulf %19, %28 : vector<16x32xf32>
    %30 = arith.truncf %29 : vector<16x32xf32> to vector<16x32xbf16>
    %c0_13 = arith.constant 0 : index
    %c0_14 = arith.constant 0 : index
    %31 = vector.load %arg5[%c0_13, %c0_14] : memref<32x128xbf16, #tpu.memory_space<vmem>>, vector<32x128xbf16>
    %cst_15 = arith.constant dense<0.000000e+00> : vector<16x128xf32>
    %32 = tpu.matmul %30, %31, %cst_15 {dimension_numbers = #tpu.dot_dimension_numbers<[1], [0], [0], [1], [0, 0, 1, 1], [], []>} : vector<16x32xbf16>, vector<32x128xbf16>, vector<16x128xf32> -> vector<16x128xf32>
    %c0_16 = arith.constant 0 : index
    %c0_17 = arith.constant 0 : index
    %33 = vector.load %arg2[%c0_16, %c0_17] : memref<16x24xbf16, #tpu.memory_space<vmem>>, vector<16x24xbf16>
    %c0_18 = arith.constant 0 : index
    %c0_19 = arith.constant 0 : index
    %34 = vector.load %arg6[%c0_18, %c0_19] : memref<24x128xbf16, #tpu.memory_space<vmem>>, vector<24x128xbf16>
    %cst_20 = arith.constant dense<0.000000e+00> : vector<16x128xf32>
    %35 = tpu.matmul %33, %34, %cst_20 {dimension_numbers = #tpu.dot_dimension_numbers<[1], [0], [0], [1], [0, 0, 1, 1], [], []>} : vector<16x24xbf16>, vector<24x128xbf16>, vector<16x128xf32> -> vector<16x128xf32>
    %36 = arith.addf %32, %35 : vector<16x128xf32>
    %c0_21 = arith.constant 0 : index
    %c0_22 = arith.constant 0 : index
    %37 = vector.load %arg7[%c0_21, %c0_22] : memref<1x128xf32, #tpu.memory_space<vmem>>, vector<1x128xf32>
    %38 = vector.broadcast %37 : vector<1x128xf32> to vector<16x128xf32>
    %39 = arith.addf %36, %38 : vector<16x128xf32>
    %c0_23 = arith.constant 0 : index
    %c0_24 = arith.constant 0 : index
    %40 = vector.load %arg8[%c0_23, %c0_24] : memref<16x128xf32, #tpu.memory_space<vmem>>, vector<16x128xf32>
    tpu.vector_store %arg8[%c0_23, %c0_24], %39 {strides = array<i32>} : memref<16x128xf32, #tpu.memory_space<vmem>>, vector<16x128xf32>,
    return
  }
  func.func @transform_0(%arg0: i32) -> (i32, i32) {
    %c0_i32 = arith.constant 0 : i32
    %c0_i32_0 = arith.constant 0 : i32
    return %arg0, %c0_i32 : i32, i32
  }
  func.func @transform_1(%arg0: i32) -> (i32, i32) {
    %c0_i32 = arith.constant 0 : i32
    %c0_i32_0 = arith.constant 0 : i32
    return %arg0, %c0_i32 : i32, i32
  }
  func.func @transform_2(%arg0: i32) -> (i32, i32) {
    %c0_i32 = arith.constant 0 : i32
    %c0_i32_0 = arith.constant 0 : i32
    %c0_i32_1 = arith.constant 0 : i32
    return %c0_i32, %c0_i32_0 : i32, i32
  }
  func.func @transform_3(%arg0: i32) -> (i32, i32) {
    %c0_i32 = arith.constant 0 : i32
    %c0_i32_0 = arith.constant 0 : i32
    %c0_i32_1 = arith.constant 0 : i32
    return %c0_i32, %c0_i32_0 : i32, i32
  }
  func.func @transform_4(%arg0: i32) -> (i32, i32) {
    %c0_i32 = arith.constant 0 : i32
    %c0_i32_0 = arith.constant 0 : i32
    %c0_i32_1 = arith.constant 0 : i32
    return %c0_i32, %c0_i32_0 : i32, i32
  }
  func.func @transform_5(%arg0: i32) -> (i32, i32) {
    %c0_i32 = arith.constant 0 : i32
    %c0_i32_0 = arith.constant 0 : i32
    %c0_i32_1 = arith.constant 0 : i32
    return %c0_i32, %c0_i32_0 : i32, i32
  }
  func.func @transform_6(%arg0: i32) -> (i32, i32) {
    %c0_i32 = arith.constant 0 : i32
    %c0_i32_0 = arith.constant 0 : i32
    %c0_i32_1 = arith.constant 0 : i32
    return %c0_i32, %c0_i32_0 : i32, i32
  }
  func.func @transform_7(%arg0: i32) -> (i32, i32) {
    %c0_i32 = arith.constant 0 : i32
    %c0_i32_0 = arith.constant 0 : i32
    return %arg0, %c0_i32 : i32, i32
  }
}

</mosaic_0001>

<llo_original>
// kernel: tpu_custom_call.1
$region0: #{tpu_custom_call.1}
  #allocation0 [shape = 'u32[]', space=smem, size = 0x4, offset = 0x4, fixed_abs, tag = 'smem constant byte address 0x4 - core index']
  #allocation1 [shape = 'u32[144,128]{1,0:T(1,128)}', space=vmem, size = 0x12000, scoped, tag = 'internal scratch']
  %s0 = inlined_call_operand.hbm [shape: bf16[16,32], index: 0, kind: input, shape index: {}]
  %s1 = inlined_call_operand.hbm [shape: bf16[16,24], index: 1, kind: input, shape index: {}]
  %s2 = inlined_call_operand.hbm [shape: bf16[32,32], index: 2, kind: input, shape index: {}]
  %s3 = inlined_call_operand.vmem [shape: f32[1,32], index: 3, kind: input, shape index: {}]
  %s4 = inlined_call_operand.hbm [shape: bf16[32,128], index: 4, kind: input, shape index: {}]
  %s5 = inlined_call_operand.vmem [shape: bf16[24,128], index: 5, kind: input, shape index: {}]
  %s6 = inlined_call_operand.vmem [shape: f32[1,128], index: 6, kind: input, shape index: {}]
  %s7 = inlined_call_operand.hbm [shape: f32[16,128], index: 7, kind: output, shape index: {}]
  %s8 = sld [smem:[#allocation0]]
  $region54: #{tpu_custom_call.1} parent=0
    _
  %s10 = ssub.s32 1, %s8
  %s11 = scalar_select 0, %s10, %s8
  $region1: #{tpu_custom_call.1} parent=0
    #allocation2 [shape = 'u8[4096]{0}', space=vmem, size = 0x1000, scoped, tag = 'input window, operand 0, single buffered']
    #allocation3 [shape = 's32[1]{0}', space=sflag, size = 0x4, scoped, tag = 'scoped memory for tpu_custom_call.1']
    #allocation4 [shape = 's32[1]{0}', space=sflag, size = 0x4, scoped, tag = 'scoped memory for tpu_custom_call.1']
    #allocation5 [shape = 'u8[4096]{0}', space=vmem, size = 0x1000, scoped, tag = 'input window, operand 1, single buffered']
    #allocation6 [shape = 's32[1]{0}', space=sflag, size = 0x4, scoped, tag = 'scoped memory for tpu_custom_call.1']
    #allocation7 [shape = 'u8[8192]{0}', space=vmem, size = 0x2000, scoped, tag = 'input window, operand 2, single buffered']
    #allocation8 [shape = 'u8[8192]{0}', space=vmem, size = 0x2000, scoped, tag = 'input window, operand 4, single buffered']
    #allocation9 [shape = 's32[1]{0}', space=sflag, size = 0x4, scoped, tag = 'scoped memory for tpu_custom_call.1']
    #allocation10 [shape = 'u8[8192]{0}', space=vmem, size = 0x2000, scoped, tag = 'output window, operand 0, single buffered']
    %12 = vsyncpa [#allocation3], 0
    %13 = vsyncpa [#allocation6], 0
    %14 = vsyncpa [#allocation9], 0
    %15 = vsyncpa [#allocation4], 0
    // Predicated region
    $region2: #{tpu_custom_call.1} parent=1 // pred_check
      _
    $region3: #{tpu_custom_call.1} parent=1 // pred_check_branch
      %17 = sbr.rel (0) target = $region5
    $region4: #{tpu_custom_call.1} parent=1 // pred_region
      %s19 = ssub.s32 128, 128
      %20 = vsyncadd [#allocation3], %s19
      %s21 = sshll.u32 [#allocation2], 4
      %s22 = int_to_ptr.vmem [resolvable:$true] %s21
      %27 = dma.hbm_to_vmem [thread:$0]  %s0, 128, %s22, [#allocation3], 64, 64, 4
    $region5: #{tpu_custom_call.1} parent=1 // pred_fallthru
      _
    // Predicated region
    $region6: #{tpu_custom_call.1} parent=1 // pred_check
      _
    $region7: #{tpu_custom_call.1} parent=1 // pred_check_branch
      %29 = sbr.rel (0) target = $region9
    $region8: #{tpu_custom_call.1} parent=1 // pred_region
      %s31 = ssub.s32 128, 128
      %32 = vsyncadd [#allocation6], %s31
      %s33 = sshll.u32 [#allocation5], 4
      %s34 = int_to_ptr.vmem [resolvable:$true] %s33
      %39 = dma.hbm_to_vmem [thread:$0]  %s1, 128, %s34, [#allocation6], 64, 64, 4
    $region9: #{tpu_custom_call.1} parent=1 // pred_fallthru
      _
    // Predicated region
    $region10: #{tpu_custom_call.1} parent=1 // pred_check
      _
    $region11: #{tpu_custom_call.1} parent=1 // pred_check_branch
      %41 = sbr.rel (0) target = $region13
    $region12: #{tpu_custom_call.1} parent=1 // pred_region
      %s43 = ssub.s32 256, 256
      %44 = vsyncadd [#allocation6], %s43
      %s45 = sshll.u32 [#allocation7], 4
      %s46 = int_to_ptr.vmem [resolvable:$true] %s45
      %51 = dma.hbm_to_vmem [thread:$0]  %s2, 256, %s46, [#allocation6], 64, 64, 4
    $region13: #{tpu_custom_call.1} parent=1 // pred_fallthru
      _
    // Predicated region
    $region14: #{tpu_custom_call.1} parent=1 // pred_check
      _
    $region15: #{tpu_custom_call.1} parent=1 // pred_check_branch
      %53 = sbr.rel (0) target = $region17
    $region16: #{tpu_custom_call.1} parent=1 // pred_region
      _
    $region17: #{tpu_custom_call.1} parent=1 // pred_fallthru
      _
    // Predicated region
    $region18: #{tpu_custom_call.1} parent=1 // pred_check
      _
    $region19: #{tpu_custom_call.1} parent=1 // pred_check_branch
      %55 = sbr.rel (0) target = $region21
    $region20: #{tpu_custom_call.1} parent=1 // pred_region
      %s57 = ssub.s32 256, 256
      %58 = vsyncadd [#allocation9], %s57
      %s59 = sshll.u32 [#allocation8], 4
      %s60 = int_to_ptr.vmem [resolvable:$true] %s59
      %65 = dma.hbm_to_vmem [thread:$0]  %s4, 256, %s60, [#allocation9], 64, 64, 4
    $region21: #{tpu_custom_call.1} parent=1 // pred_fallthru
      _
    // Predicated region
    $region22: #{tpu_custom_call.1} parent=1 // pred_check
      _
    $region23: #{tpu_custom_call.1} parent=1 // pred_check_branch
      %67 = sbr.rel (0) target = $region25
    $region24: #{tpu_custom_call.1} parent=1 // pred_region
      _
    $region25: #{tpu_custom_call.1} parent=1 // pred_fallthru
      _
    // Predicated region
    $region26: #{tpu_custom_call.1} parent=1 // pred_check
      _
    $region27: #{tpu_custom_call.1} parent=1 // pred_check_branch
      %69 = sbr.rel (0) target = $region29
    $region28: #{tpu_custom_call.1} parent=1 // pred_region
      _
    $region29: #{tpu_custom_call.1} parent=1 // pred_fallthru
      _
    // Predicated region
    $region30: #{tpu_custom_call.1} parent=1 // pred_check
      _
    $region31: #{tpu_custom_call.1} parent=1 // pred_check_branch
      %71 = sbr.rel (0) target = $region33
    $region32: #{tpu_custom_call.1} parent=1 // pred_region
      %72 = dma.done [#allocation3], 128
    $region33: #{tpu_custom_call.1} parent=1 // pred_fallthru
      _
    // Predicated region
    $region34: #{tpu_custom_call.1} parent=1 // pred_check
      _
    $region35: #{tpu_custom_call.1} parent=1 // pred_check_branch
      %74 = sbr.rel (0) target = $region37
    $region36: #{tpu_custom_call.1} parent=1 // pred_region
      %75 = dma.done [#allocation6], 128
    $region37: #{tpu_custom_call.1} parent=1 // pred_fallthru
      _
    // Predicated region
    $region38: #{tpu_custom_call.1} parent=1 // pred_check
      _
    $region39: #{tpu_custom_call.1} parent=1 // pred_check_branch
      %77 = sbr.rel (0) target = $region41
    $region40: #{tpu_custom_call.1} parent=1 // pred_region
      %78 = dma.done [#allocation6], 256
    $region41: #{tpu_custom_call.1} parent=1 // pred_fallthru
      _
    // Predicated region
    $region42: #{tpu_custom_call.1} parent=1 // pred_check
      _
    $region43: #{tpu_custom_call.1} parent=1 // pred_check_branch
      %80 = sbr.rel (0) target = $region45
    $region44: #{tpu_custom_call.1} parent=1 // pred_region
      %81 = dma.done [#allocation9], 256
    $region45: #{tpu_custom_call.1} parent=1 // pred_fallthru
      _
    %v83 = vld [vmem:[#allocation2] sm:$0xf]
    %v84 = vld [vmem:[#allocation2 + $0x4] sm:$0xf]
    %v85 = vld [vmem:[#allocation7] sm:$0xf]
    %v86 = vld [vmem:[#allocation7 + $0x4] sm:$0xf]
    %v87 = vld [vmem:[#allocation7 + $0x8] sm:$0xf]
    %v88 = vld [vmem:[#allocation7 + $0xc] sm:$0xf]
    %v89 = vld [vmem:[%s3] sm:$0x1]
    %v91 = vlaneseq
    %v92 = vshrl.u32 %v91, 7
    %v93 = vsub.s32 0, %v92
    %v94 = vrot.slane %v89, %v93
    %v98 = vunpack.c.l.b16 %v83
    %v99 = vunpack.c.l.b16 %v84
    %v100 = vpack.c.b16 %v99, %v98
    %v105 = vunpack.c.l.b16 %v85
    %v106 = vunpack.c.l.b16 %v86
    %v107 = vunpack.c.l.b16 %v87
    %v108 = vunpack.c.l.b16 %v88
    %v109 = vpack.c.b16 %v106, %v105
    %v110 = vpack.c.b16 %v108, %v107
    %vm113 = vcmask 261120
    %v115 = vsel %vm113, %v100, 0
    %117 = vmatprep.subr.bf16.mxu0 0
    %118 = vmatpush1.bf16.msra.mxu0 %v109
    %119 = vmatprep.subr.bf16.mxu0 0
    %120 = vmatpush1.bf16.msra.mxu0 %v110
    %121 = vmatprep.subr.bf16.mxu0 0
    %122 = vmatpush1.bf16.msra.mxu0 0
    %123 = vmatprep.subr.bf16.mxu0 0
    %124 = vmatpush1.bf16.msra.mxu0 0
    %125 = vmatprep.subr.bf16.mxu0 0
    %126 = vmatpush1.bf16.msra.mxu0 0
    %127 = vmatprep.subr.bf16.mxu0 0
    %128 = vmatpush1.bf16.msra.mxu0 0
    %129 = vmatprep.subr.bf16.mxu0 0
    %130 = vmatpush1.bf16.msra.mxu0 0
    %131 = vmatprep.subr.bf16.mxu0 0
    %132 = vmatpush1.bf16.msra.mxu0 0
    %133 = vmatprep.subr.bf16.mxu0 0
    %134 = vmatpush1.bf16.msra.mxu0 0
    %135 = vmatprep.subr.bf16.mxu0 0
    %136 = vmatpush1.bf16.msra.mxu0 0
    %137 = vmatprep.subr.bf16.mxu0 0
    %138 = vmatpush1.bf16.msra.mxu0 0
    %139 = vmatprep.subr.bf16.mxu0 0
    %140 = vmatpush1.bf16.msra.mxu0 0
    %141 = vmatprep.subr.bf16.mxu0 0
    %142 = vmatpush1.bf16.msra.mxu0 0
    %143 = vmatprep.subr.bf16.mxu0 0
    %144 = vmatpush1.bf16.msra.mxu0 0
    %145 = vmatprep.subr.bf16.mxu0 0
    %146 = vmatpush1.bf16.msra.mxu0 0
    %147 = vmatprep.subr.bf16.mxu0 0
    %148 = vmatpush1.bf16.msra.mxu0 0
    %149 = vmatprep.mubr.bf16.mxu0 0
    %150 = vmatmul.mubr.bf16.gmra.mrb[0].mxu0 %v115
    %v151 = vpop.f32.mrb[0].mxu0
    %v152 = vadd.f32 %v94, %v151
    %v153 = vpop.f32.mrb[0].mxu0
    %v154 = vpop.f32.mrb[0].mxu0
    %v155 = vadd.f32 %v94, %v154
    %v156 = vpop.f32.mrb[0].mxu0
    %157 = vdwg.mxu0
    %v158 = vmul.f32 %v152, 0.5
    %v159 = vmul.f32 %v155, 0.5
    %v160 = vmul.f32 %v152, 0.70710677
    %v161 = vmul.f32 %v155, 0.70710677
    %v162 = verf.f32.pop %v160
    %v163 = verf.f32.pop %v161
    %v164 = vadd.f32 %v162, 1.0
    %v165 = vadd.f32 %v163, 1.0
    %v166 = vmul.f32 %v158, %v164
    %v167 = vmul.f32 %v159, %v165
    %v168 = vsel %vm113, %v166, 0.0
    %169 = vadd.xlane.f32.xlu0 %v168
    %v170 = vpop.xlane.xlu0 %169
    %v171 = vsel %vm113, %v167, 0.0
    %172 = vadd.xlane.f32.xlu0 %v171
    %v173 = vpop.xlane.xlu0 %172
    %v174 = vrcp.pop 32.0
    %v175 = vmul.f32 %v170, %v174
    %v176 = vmul.f32 %v173, %v174
    %v177 = vsub.f32 %v166, %v175
    %v178 = vsub.f32 %v167, %v176
    %v179 = vmul.f32 %v177, %v177
    %v180 = vmul.f32 %v178, %v178
    %v181 = vsel %vm113, %v179, 0.0
    %182 = vadd.xlane.f32.xlu0 %v181
    %v183 = vpop.xlane.xlu0 %182
    %v184 = vsel %vm113, %v180, 0.0
    %185 = vadd.xlane.f32.xlu0 %v184
    %v186 = vpop.xlane.xlu0 %185
    %v187 = vmul.f32 %v183, %v174
    %v188 = vmul.f32 %v186, %v174
    %v189 = vadd.f32 %v187, 1e-12
    %v190 = vadd.f32 %v188, 1e-12
    %v191 = vrsqrt.pop %v189
    %v192 = vrsqrt.pop %v190
    %v193 = vmul.f32 %v177, %v191
    %v194 = vmul.f32 %v178, %v192
    %v195 = vpack.c.bf16 %v194, %v193
    %v196 = vld [vmem:[#allocation8] sm:$0xf]
    %v197 = vld [vmem:[#allocation8 + $0x4] sm:$0xf]
    %v198 = vld [vmem:[#allocation8 + $0x8] sm:$0xf]
    %v199 = vld [vmem:[#allocation8 + $0xc] sm:$0xf]
    %v200 = vld [vmem:[#allocation5] sm:$0xf]
    %v201 = vld [vmem:[#allocation5 + $0x4] sm:$0xf]
    %v202 = vld [vmem:[%s5] sm:$0xf]
    %v203 = vld [vmem:[%s5 + $0x4] sm:$0xf]
    %v204 = vld [vmem:[%s5 + $0x8] sm:$0xf]
    %v207 = vunpack.c.l.b16 %v200
    %v208 = vunpack.c.l.b16 %v201
    %v209 = vpack.c.b16 %v208, %v207
    %v213 = vunpack.c.l.b16 %v202
    %v214 = vunpack.c.l.b16 %v203
    %v215 = vunpack.c.l.b16 %v204
    %v216 = vpack.c.b16 %v214, %v213
    %v217 = vpack.c.b16 %v215, %v215
    %vm219 = vcmask 195584
    %v221 = vsel %vm219, %v209, 0
    %vm223 = vcmask 1043456
    %v225 = vsel %vm223, %v217, 0
    %227 = vmatprep.subr.bf16.mxu0 0
    %228 = vmatpush1.bf16.msra.mxu0 %v216
    %229 = vmatprep.subr.bf16.mxu0 0
    %230 = vmatpush1.bf16.msra.mxu0 %v225
    %231 = vmatprep.subr.bf16.mxu0 0
    %232 = vmatpush1.bf16.msra.mxu0 0
    %233 = vmatprep.subr.bf16.mxu0 0
    %234 = vmatpush1.bf16.msra.mxu0 0
    %235 = vmatprep.subr.bf16.mxu0 0
    %236 = vmatpush1.bf16.msra.mxu0 0
    %237 = vmatprep.subr.bf16.mxu0 0
    %238 = vmatpush1.bf16.msra.mxu0 0
    %239 = vmatprep.subr.bf16.mxu0 0
    %240 = vmatpush1.bf16.msra.mxu0 0
    %241 = vmatprep.subr.bf16.mxu0 0
    %242 = vmatpush1.bf16.msra.mxu0 0
    %243 = vmatprep.subr.bf16.mxu0 0
    %244 = vmatpush1.bf16.msra.mxu0 0
    %245 = vmatprep.subr.bf16.mxu0 0
    %246 = vmatpush1.bf16.msra.mxu0 0
    %247 = vmatprep.subr.bf16.mxu0 0
    %248 = vmatpush1.bf16.msra.mxu0 0
    %249 = vmatprep.subr.bf16.mxu0 0
    %250 = vmatpush1.bf16.msra.mxu0 0
    %251 = vmatprep.subr.bf16.mxu0 0
    %252 = vmatpush1.bf16.msra.mxu0 0
    %253 = vmatprep.subr.bf16.mxu0 0
    %254 = vmatpush1.bf16.msra.mxu0 0
    %255 = vmatprep.subr.bf16.mxu0 0
    %256 = vmatpush1.bf16.msra.mxu0 0
    %257 = vmatprep.subr.bf16.mxu0 0
    %258 = vmatpush1.bf16.msra.mxu0 0
    %259 = vmatprep.mubr.bf16.mxu0 0
    %260 = vmatmul.mubr.bf16.gmra.mrb[0].mxu0 %v221
    %v261 = vpop.f32.mrb[0].mxu0
    %v262 = vadd.f32 0.0, %v261
    %v263 = vpop.f32.mrb[0].mxu0
    %v264 = vpop.f32.mrb[0].mxu0
    %v265 = vadd.f32 0.0, %v264
    %v266 = vpop.f32.mrb[0].mxu0
    %267 = vdwg.mxu0
    %v272 = vunpack.c.l.b16 %v196
    %v273 = vunpack.c.l.b16 %v197
    %v274 = vunpack.c.l.b16 %v198
    %v275 = vunpack.c.l.b16 %v199
    %v276 = vpack.c.b16 %v273, %v272
    %v277 = vpack.c.b16 %v275, %v274
    %v281 = vsel %vm113, %v195, 0
    %283 = vmatprep.subr.bf16.mxu0 0
    %284 = vmatpush1.bf16.msra.mxu0 %v276
    %285 = vmatprep.subr.bf16.mxu0 0
    %286 = vmatpush1.bf16.msra.mxu0 %v277
    %287 = vmatprep.subr.bf16.mxu0 0
    %288 = vmatpush1.bf16.msra.mxu0 0
    %289 = vmatprep.subr.bf16.mxu0 0
    %290 = vmatpush1.bf16.msra.mxu0 0
    %291 = vmatprep.subr.bf16.mxu0 0
    %292 = vmatpush1.bf16.msra.mxu0 0
    %293 = vmatprep.subr.bf16.mxu0 0
    %294 = vmatpush1.bf16.msra.mxu0 0
    %295 = vmatprep.subr.bf16.mxu0 0
    %296 = vmatpush1.bf16.msra.mxu0 0
    %297 = vmatprep.subr.bf16.mxu0 0
    %298 = vmatpush1.bf16.msra.mxu0 0
    %299 = vmatprep.subr.bf16.mxu0 0
    %300 = vmatpush1.bf16.msra.mxu0 0
    %301 = vmatprep.subr.bf16.mxu0 0
    %302 = vmatpush1.bf16.msra.mxu0 0
    %303 = vmatprep.subr.bf16.mxu0 0
    %304 = vmatpush1.bf16.msra.mxu0 0
    %305 = vmatprep.subr.bf16.mxu0 0
    %306 = vmatpush1.bf16.msra.mxu0 0
    %307 = vmatprep.subr.bf16.mxu0 0
    %308 = vmatpush1.bf16.msra.mxu0 0
    %309 = vmatprep.subr.bf16.mxu0 0
    %310 = vmatpush1.bf16.msra.mxu0 0
    %311 = vmatprep.subr.bf16.mxu0 0
    %312 = vmatpush1.bf16.msra.mxu0 0
    %313 = vmatprep.subr.bf16.mxu0 0
    %314 = vmatpush1.bf16.msra.mxu0 0
    %315 = vmatprep.mubr.bf16.mxu0 0
    %316 = vmatmul.mubr.bf16.gmra.mrb[0].mxu0 %v281
    %v317 = vpop.f32.mrb[0].mxu0
    %v318 = vadd.f32 %v262, %v317
    %v319 = vpop.f32.mrb[0].mxu0
    %v320 = vpop.f32.mrb[0].mxu0
    %v321 = vadd.f32 %v265, %v320
    %v322 = vpop.f32.mrb[0].mxu0
    %323 = vdwg.mxu0
    %v324 = vld [vmem:[%s6] sm:$0x1]
    %v326 = vlaneseq
    %v327 = vshrl.u32 %v326, 7
    %v328 = vsub.s32 0, %v327
    %v329 = vrot.slane %v324, %v328
    %v331 = vadd.f32 %v318, %v329
    %v332 = vadd.f32 %v321, %v329
    %333 = vst [vmem:[#allocation10] sm:$0xff] %v331
    %334 = vst [vmem:[#allocation10 + $0x8] sm:$0xff] %v332
    // Predicated region
    $region46: #{tpu_custom_call.1} parent=1 // pred_check
      _
    $region47: #{tpu_custom_call.1} parent=1 // pred_check_branch
      %336 = sbr.rel (0) target = $region49
    $region48: #{tpu_custom_call.1} parent=1 // pred_region
      %s338 = ssub.s32 256, 256
      %339 = vsyncadd [#allocation4], %s338
      %s340 = sshll.u32 [#allocation10], 4
      %s341 = int_to_ptr.vmem [resolvable:$true] %s340
      %346 = dma.vmem_to_hbm [thread:$0]  %s341, 256, %s7, [#allocation4], 128, 128, 8
    $region49: #{tpu_custom_call.1} parent=1 // pred_fallthru
      _
    // Predicated region
    $region50: #{tpu_custom_call.1} parent=1 // pred_check
      _
    $region51: #{tpu_custom_call.1} parent=1 // pred_check_branch
      %348 = sbr.rel (0) target = $region53
    $region52: #{tpu_custom_call.1} parent=1 // pred_region
      %349 = dma.done [#allocation4], 256
    $region53: #{tpu_custom_call.1} parent=1 // pred_fallthru
      _
    %350 = vsyncpa [#allocation3], 1
    %351 = vsyncpa [#allocation6], 1
    %352 = vsyncpa [#allocation9], 1
    %353 = vsyncpa [#allocation4], 1

// kernel: tpu_custom_call.1
$region0: #{tpu_custom_call.1}
  #allocation0 [shape = 'u32[]', space=smem, size = 0x4, offset = 0x4, fixed_abs, tag = 'smem constant byte address 0x4 - core index']
  #allocation1 [shape = 'u32[144,128]{1,0:T(1,128)}', space=vmem, size = 0x12000, scoped, tag = 'internal scratch']
  %s0 = inlined_call_operand.hbm [shape: bf16[16,32], index: 0, kind: input, shape index: {}]
  %s1 = inlined_call_operand.hbm [shape: bf16[16,24], index: 1, kind: input, shape index: {}]
  %s2 = inlined_call_operand.hbm [shape: bf16[32,32], index: 2, kind: input, shape index: {}]
  %s3 = inlined_call_operand.vmem [shape: f32[1,32], index: 3, kind: input, shape index: {}]
  %s4 = inlined_call_operand.hbm [shape: bf16[32,128], index: 4, kind: input, shape index: {}]
  %s5 = inlined_call_operand.vmem [shape: bf16[24,128], index: 5, kind: input, shape index: {}]
  %s6 = inlined_call_operand.vmem [shape: f32[1,128], index: 6, kind: input, shape index: {}]
  %s7 = inlined_call_operand.hbm [shape: f32[16,128], index: 7, kind: output, shape index: {}]
  %s8 = sld [smem:[#allocation0]]
  $region54: #{tpu_custom_call.1} parent=0
    _
  %s10 = ssub.s32 1, %s8
  %s11 = scalar_select 0, %s10, %s8
  $region1: #{tpu_custom_call.1} parent=0
    #allocation2 [shape = 'u8[4096]{0}', space=vmem, size = 0x1000, scoped, tag = 'input window, operand 0, single buffered']
    #allocation3 [shape = 's32[1]{0}', space=sflag, size = 0x4, scoped, tag = 'scoped memory for tpu_custom_call.1']
    #allocation4 [shape = 's32[1]{0}', space=sflag, size = 0x4, scoped, tag = 'scoped memory for tpu_custom_call.1']
    #allocation5 [shape = 'u8[4096]{0}', space=vmem, size = 0x1000, scoped, tag = 'input window, operand 1, single buffered']
    #allocation6 [shape = 's32[1]{0}', space=sflag, size = 0x4, scoped, tag = 'scoped memory for tpu_custom_call.1']
    #allocation7 [shape = 'u8[8192]{0}', space=vmem, size = 0x2000, scoped, tag = 'input window, operand 2, single buffered']
    #allocation8 [shape = 'u8[8192]{0}', space=vmem, size = 0x2000, scoped, tag = 'input window, operand 4, single buffered']
    #allocation9 [shape = 's32[1]{0}', space=sflag, size = 0x4, scoped, tag = 'scoped memory for tpu_custom_call.1']
    #allocation10 [shape = 'u8[8192]{0}', space=vmem, size = 0x2000, scoped, tag = 'output window, operand 0, single buffered']
    %12 = vsyncpa [#allocation3], 0
    %13 = vsyncpa [#allocation6], 0
    %14 = vsyncpa [#allocation9], 0
    %15 = vsyncpa [#allocation4], 0
    // Predicated region
    $region2: #{tpu_custom_call.1} parent=1 // pred_check
      _
    $region3: #{tpu_custom_call.1} parent=1 // pred_check_branch
      %17 = sbr.rel (0) target = $region5
    $region4: #{tpu_custom_call.1} parent=1 // pred_region
      %s19 = ssub.s32 128, 128
      %20 = vsyncadd [#allocation3], %s19
      %s21 = sshll.u32 [#allocation2], 4
      %s22 = int_to_ptr.vmem [resolvable:$true] %s21
      %27 = dma.hbm_to_vmem [thread:$0]  %s0, 128, %s22, [#allocation3], 64, 64, 4
    $region5: #{tpu_custom_call.1} parent=1 // pred_fallthru
      _
    // Predicated region
    $region6: #{tpu_custom_call.1} parent=1 // pred_check
      _
    $region7: #{tpu_custom_call.1} parent=1 // pred_check_branch
      %29 = sbr.rel (0) target = $region9
    $region8: #{tpu_custom_call.1} parent=1 // pred_region
      %s31 = ssub.s32 128, 128
      %32 = vsyncadd [#allocation6], %s31
      %s33 = sshll.u32 [#allocation5], 4
      %s34 = int_to_ptr.vmem [resolvable:$true] %s33
      %39 = dma.hbm_to_vmem [thread:$0]  %s1, 128, %s34, [#allocation6], 64, 64, 4
    $region9: #{tpu_custom_call.1} parent=1 // pred_fallthru
      _
    // Predicated region
    $region10: #{tpu_custom_call.1} parent=1 // pred_check
      _
    $region11: #{tpu_custom_call.1} parent=1 // pred_check_branch
      %41 = sbr.rel (0) target = $region13
    $region12: #{tpu_custom_call.1} parent=1 // pred_region
      %s43 = ssub.s32 256, 256
      %44 = vsyncadd [#allocation6], %s43
      %s45 = sshll.u32 [#allocation7], 4
      %s46 = int_to_ptr.vmem [resolvable:$true] %s45
      %51 = dma.hbm_to_vmem [thread:$0]  %s2, 256, %s46, [#allocation6], 64, 64, 4
    $region13: #{tpu_custom_call.1} parent=1 // pred_fallthru
      _
    // Predicated region
    $region14: #{tpu_custom_call.1} parent=1 // pred_check
      _
    $region15: #{tpu_custom_call.1} parent=1 // pred_check_branch
      %53 = sbr.rel (0) target = $region17
    $region16: #{tpu_custom_call.1} parent=1 // pred_region
      _
    $region17: #{tpu_custom_call.1} parent=1 // pred_fallthru
      _
    // Predicated region
    $region18: #{tpu_custom_call.1} parent=1 // pred_check
      _
    $region19: #{tpu_custom_call.1} parent=1 // pred_check_branch
      %55 = sbr.rel (0) target = $region21
    $region20: #{tpu_custom_call.1} parent=1 // pred_region
      %s57 = ssub.s32 256, 256
      %58 = vsyncadd [#allocation9], %s57
      %s59 = sshll.u32 [#allocation8], 4
      %s60 = int_to_ptr.vmem [resolvable:$true] %s59
      %65 = dma.hbm_to_vmem [thread:$0]  %s4, 256, %s60, [#allocation9], 64, 64, 4
    $region21: #{tpu_custom_call.1} parent=1 // pred_fallthru
      _
    // Predicated region
    $region22: #{tpu_custom_call.1} parent=1 // pred_check
      _
    $region23: #{tpu_custom_call.1} parent=1 // pred_check_branch
      %67 = sbr.rel (0) target = $region25
    $region24: #{tpu_custom_call.1} parent=1 // pred_region
      _
    $region25: #{tpu_custom_call.1} parent=1 // pred_fallthru
      _
    // Predicated region
    $region26: #{tpu_custom_call.1} parent=1 // pred_check
      _
    $region27: #{tpu_custom_call.1} parent=1 // pred_check_branch
      %69 = sbr.rel (0) target = $region29
    $region28: #{tpu_custom_call.1} parent=1 // pred_region
      _
    $region29: #{tpu_custom_call.1} parent=1 // pred_fallthru
      _
    // Predicated region
    $region30: #{tpu_custom_call.1} parent=1 // pred_check
      _
    $region31: #{tpu_custom_call.1} parent=1 // pred_check_branch
      %71 = sbr.rel (0) target = $region33
    $region32: #{tpu_custom_call.1} parent=1 // pred_region
      %72 = dma.done [#allocation3], 128
    $region33: #{tpu_custom_call.1} parent=1 // pred_fallthru
      _
    // Predicated region
    $region34: #{tpu_custom_call.1} parent=1 // pred_check
      _
    $region35: #{tpu_custom_call.1} parent=1 // pred_check_branch
      %74 = sbr.rel (0) target = $region37
    $region36: #{tpu_custom_call.1} parent=1 // pred_region
      %75 = dma.done [#allocation6], 128
    $region37: #{tpu_custom_call.1} parent=1 // pred_fallthru
      _
    // Predicated region
    $region38: #{tpu_custom_call.1} parent=1 // pred_check
      _
    $region39: #{tpu_custom_call.1} parent=1 // pred_check_branch
      %77 = sbr.rel (0) target = $region41
    $region40: #{tpu_custom_call.1} parent=1 // pred_region
      %78 = dma.done [#allocation6], 256
    $region41: #{tpu_custom_call.1} parent=1 // pred_fallthru
      _
    // Predicated region
    $region42: #{tpu_custom_call.1} parent=1 // pred_check
      _
    $region43: #{tpu_custom_call.1} parent=1 // pred_check_branch
      %80 = sbr.rel (0) target = $region45
    $region44: #{tpu_custom_call.1} parent=1 // pred_region
      %81 = dma.done [#allocation9], 256
    $region45: #{tpu_custom_call.1} parent=1 // pred_fallthru
      _
    %v83 = vld [vmem:[#allocation2] sm:$0xf]
    %v84 = vld [vmem:[#allocation2 + $0x4] sm:$0xf]
    %v85 = vld [vmem:[#allocation7] sm:$0xf]
    %v86 = vld [vmem:[#allocation7 + $0x4] sm:$0xf]
    %v87 = vld [vmem:[#allocation7 + $0x8] sm:$0xf]
    %v88 = vld [vmem:[#allocation7 + $0xc] sm:$0xf]
    %v89 = vld [vmem:[%s3] sm:$0x1]
    %v91 = vlaneseq
    %v92 = vshrl.u32 %v91, 7
    %v93 = vsub.s32 0, %v92
    %v94 = vrot.slane %v89, %v93
    %v98 = vunpack.c.l.b16 %v83
    %v99 = vunpack.c.l.b16 %v84
    %v100 = vpack.c.b16 %v99, %v98
    %v105 = vunpack.c.l.b16 %v85
    %v106 = vunpack.c.l.b16 %v86
    %v107 = vunpack.c.l.b16 %v87
    %v108 = vunpack.c.l.b16 %v88
    %v109 = vpack.c.b16 %v106, %v105
    %v110 = vpack.c.b16 %v108, %v107
    %vm113 = vcmask 261120
    %v115 = vsel %vm113, %v100, 0
    %117 = vmatprep.subr.bf16.mxu0 0
    %118 = vmatpush1.bf16.msra.mxu0 %v109
    %119 = vmatprep.subr.bf16.mxu0 0
    %120 = vmatpush1.bf16.msra.mxu0 %v110
    %121 = vmatprep.subr.bf16.mxu0 0
    %122 = vmatpush1.bf16.msra.mxu0 0
    %123 = vmatprep.subr.bf16.mxu0 0
    %124 = vmatpush1.bf16.msra.mxu0 0
    %125 = vmatprep.subr.bf16.mxu0 0
    %126 = vmatpush1.bf16.msra.mxu0 0
    %127 = vmatprep.subr.bf16.mxu0 0
    %128 = vmatpush1.bf16.msra.mxu0 0
    %129 = vmatprep.subr.bf16.mxu0 0
    %130 = vmatpush1.bf16.msra.mxu0 0
    %131 = vmatprep.subr.bf16.mxu0 0
    %132 = vmatpush1.bf16.msra.mxu0 0
    %133 = vmatprep.subr.bf16.mxu0 0
    %134 = vmatpush1.bf16.msra.mxu0 0
    %135 = vmatprep.subr.bf16.mxu0 0
    %136 = vmatpush1.bf16.msra.mxu0 0
    %137 = vmatprep.subr.bf16.mxu0 0
    %138 = vmatpush1.bf16.msra.mxu0 0
    %139 = vmatprep.subr.bf16.mxu0 0
    %140 = vmatpush1.bf16.msra.mxu0 0
    %141 = vmatprep.subr.bf16.mxu0 0
    %142 = vmatpush1.bf16.msra.mxu0 0
    %143 = vmatprep.subr.bf16.mxu0 0
    %144 = vmatpush1.bf16.msra.mxu0 0
    %145 = vmatprep.subr.bf16.mxu0 0
    %146 = vmatpush1.bf16.msra.mxu0 0
    %147 = vmatprep.subr.bf16.mxu0 0
    %148 = vmatpush1.bf16.msra.mxu0 0
    %149 = vmatprep.mubr.bf16.mxu0 0
    %150 = vmatmul.mubr.bf16.gmra.mrb[0].mxu0 %v115
    %v151 = vpop.f32.mrb[0].mxu0
    %v152 = vadd.f32 %v94, %v151
    %v153 = vpop.f32.mrb[0].mxu0
    %v154 = vpop.f32.mrb[0].mxu0
    %v155 = vadd.f32 %v94, %v154
    %v156 = vpop.f32.mrb[0].mxu0
    %157 = vdwg.mxu0
    %v158 = vmul.f32 %v152, 0.5
    %v159 = vmul.f32 %v155, 0.5
    %v160 = vmul.f32 %v152, 0.70710677
    %v161 = vmul.f32 %v155, 0.70710677
    %v162 = verf.f32.pop %v160
    %v163 = verf.f32.pop %v161
    %v164 = vadd.f32 %v162, 1.0
    %v165 = vadd.f32 %v163, 1.0
    %v166 = vmul.f32 %v158, %v164
    %v167 = vmul.f32 %v159, %v165
    %v168 = vsel %vm113, %v166, 0.0
    %169 = vadd.xlane.f32.xlu0 %v168
    %v170 = vpop.xlane.xlu0 %169
    %v171 = vsel %vm113, %v167, 0.0
    %172 = vadd.xlane.f32.xlu0 %v171
    %v173 = vpop.xlane.xlu0 %172
    %v174 = vrcp.pop 32.0
    %v175 = vmul.f32 %v170, %v174
    %v176 = vmul.f32 %v173, %v174
    %v177 = vsub.f32 %v166, %v175
    %v178 = vsub.f32 %v167, %v176
    %v179 = vmul.f32 %v177, %v177
    %v180 = vmul.f32 %v178, %v178
    %v181 = vsel %vm113, %v179, 0.0
    %182 = vadd.xlane.f32.xlu0 %v181
    %v183 = vpop.xlane.xlu0 %182
    %v184 = vsel %vm113, %v180, 0.0
    %185 = vadd.xlane.f32.xlu0 %v184
    %v186 = vpop.xlane.xlu0 %185
    %v187 = vmul.f32 %v183, %v174
    %v188 = vmul.f32 %v186, %v174
    %v189 = vadd.f32 %v187, 1e-12
    %v190 = vadd.f32 %v188, 1e-12
    %v191 = vrsqrt.pop %v189
    %v192 = vrsqrt.pop %v190
    %v193 = vmul.f32 %v177, %v191
    %v194 = vmul.f32 %v178, %v192
    %v195 = vpack.c.bf16 %v194, %v193
    %v196 = vld [vmem:[#allocation8] sm:$0xf]
    %v197 = vld [vmem:[#allocation8 + $0x4] sm:$0xf]
    %v198 = vld [vmem:[#allocation8 + $0x8] sm:$0xf]
    %v199 = vld [vmem:[#allocation8 + $0xc] sm:$0xf]
    %v200 = vld [vmem:[#allocation5] sm:$0xf]
    %v201 = vld [vmem:[#allocation5 + $0x4] sm:$0xf]
    %v202 = vld [vmem:[%s5] sm:$0xf]
    %v203 = vld [vmem:[%s5 + $0x4] sm:$0xf]
    %v204 = vld [vmem:[%s5 + $0x8] sm:$0xf]
    %v207 = vunpack.c.l.b16 %v200
    %v208 = vunpack.c.l.b16 %v201
    %v209 = vpack.c.b16 %v208, %v207
    %v213 = vunpack.c.l.b16 %v202
    %v214 = vunpack.c.l.b16 %v203
    %v215 = vunpack.c.l.b16 %v204
    %v216 = vpack.c.b16 %v214, %v213
    %v217 = vpack.c.b16 %v215, %v215
    %vm219 = vcmask 195584
    %v221 = vsel %vm219, %v209, 0
    %vm223 = vcmask 1043456
    %v225 = vsel %vm223, %v217, 0
    %227 = vmatprep.subr.bf16.mxu0 0
    %228 = vmatpush1.bf16.msra.mxu0 %v216
    %229 = vmatprep.subr.bf16.mxu0 0
    %230 = vmatpush1.bf16.msra.mxu0 %v225
    %231 = vmatprep.subr.bf16.mxu0 0
    %232 = vmatpush1.bf16.msra.mxu0 0
    %233 = vmatprep.subr.bf16.mxu0 0
    %234 = vmatpush1.bf16.msra.mxu0 0
    %235 = vmatprep.subr.bf16.mxu0 0
    %236 = vmatpush1.bf16.msra.mxu0 0
    %237 = vmatprep.subr.bf16.mxu0 0
    %238 = vmatpush1.bf16.msra.mxu0 0
    %239 = vmatprep.subr.bf16.mxu0 0
    %240 = vmatpush1.bf16.msra.mxu0 0
    %241 = vmatprep.subr.bf16.mxu0 0
    %242 = vmatpush1.bf16.msra.mxu0 0
    %243 = vmatprep.subr.bf16.mxu0 0
    %244 = vmatpush1.bf16.msra.mxu0 0
    %245 = vmatprep.subr.bf16.mxu0 0
    %246 = vmatpush1.bf16.msra.mxu0 0
    %247 = vmatprep.subr.bf16.mxu0 0
    %248 = vmatpush1.bf16.msra.mxu0 0
    %249 = vmatprep.subr.bf16.mxu0 0
    %250 = vmatpush1.bf16.msra.mxu0 0
    %251 = vmatprep.subr.bf16.mxu0 0
    %252 = vmatpush1.bf16.msra.mxu0 0
    %253 = vmatprep.subr.bf16.mxu0 0
    %254 = vmatpush1.bf16.msra.mxu0 0
    %255 = vmatprep.subr.bf16.mxu0 0
    %256 = vmatpush1.bf16.msra.mxu0 0
    %257 = vmatprep.subr.bf16.mxu0 0
    %258 = vmatpush1.bf16.msra.mxu0 0
    %259 = vmatprep.mubr.bf16.mxu0 0
    %260 = vmatmul.mubr.bf16.gmra.mrb[0].mxu0 %v221
    %v261 = vpop.f32.mrb[0].mxu0
    %v262 = vadd.f32 0.0, %v261
    %v263 = vpop.f32.mrb[0].mxu0
    %v264 = vpop.f32.mrb[0].mxu0
    %v265 = vadd.f32 0.0, %v264
    %v266 = vpop.f32.mrb[0].mxu0
    %267 = vdwg.mxu0
    %v272 = vunpack.c.l.b16 %v196
    %v273 = vunpack.c.l.b16 %v197
    %v274 = vunpack.c.l.b16 %v198
    %v275 = vunpack.c.l.b16 %v199
    %v276 = vpack.c.b16 %v273, %v272
    %v277 = vpack.c.b16 %v275, %v274
    %v281 = vsel %vm113, %v195, 0
    %283 = vmatprep.subr.bf16.mxu0 0
    %284 = vmatpush1.bf16.msra.mxu0 %v276
    %285 = vmatprep.subr.bf16.mxu0 0
    %286 = vmatpush1.bf16.msra.mxu0 %v277
    %287 = vmatprep.subr.bf16.mxu0 0
    %288 = vmatpush1.bf16.msra.mxu0 0
    %289 = vmatprep.subr.bf16.mxu0 0
    %290 = vmatpush1.bf16.msra.mxu0 0
    %291 = vmatprep.subr.bf16.mxu0 0
    %292 = vmatpush1.bf16.msra.mxu0 0
    %293 = vmatprep.subr.bf16.mxu0 0
    %294 = vmatpush1.bf16.msra.mxu0 0
    %295 = vmatprep.subr.bf16.mxu0 0
    %296 = vmatpush1.bf16.msra.mxu0 0
    %297 = vmatprep.subr.bf16.mxu0 0
    %298 = vmatpush1.bf16.msra.mxu0 0
    %299 = vmatprep.subr.bf16.mxu0 0
    %300 = vmatpush1.bf16.msra.mxu0 0
    %301 = vmatprep.subr.bf16.mxu0 0
    %302 = vmatpush1.bf16.msra.mxu0 0
    %303 = vmatprep.subr.bf16.mxu0 0
    %304 = vmatpush1.bf16.msra.mxu0 0
    %305 = vmatprep.subr.bf16.mxu0 0
    %306 = vmatpush1.bf16.msra.mxu0 0
    %307 = vmatprep.subr.bf16.mxu0 0
    %308 = vmatpush1.bf16.msra.mxu0 0
    %309 = vmatprep.subr.bf16.mxu0 0
    %310 = vmatpush1.bf16.msra.mxu0 0
    %311 = vmatprep.subr.bf16.mxu0 0
    %312 = vmatpush1.bf16.msra.mxu0 0
    %313 = vmatprep.subr.bf16.mxu0 0
    %314 = vmatpush1.bf16.msra.mxu0 0
    %315 = vmatprep.mubr.bf16.mxu0 0
    %316 = vmatmul.mubr.bf16.gmra.mrb[0].mxu0 %v281
    %v317 = vpop.f32.mrb[0].mxu0
    %v318 = vadd.f32 %v262, %v317
    %v319 = vpop.f32.mrb[0].mxu0
    %v320 = vpop.f32.mrb[0].mxu0
    %v321 = vadd.f32 %v265, %v320
    %v322 = vpop.f32.mrb[0].mxu0
    %323 = vdwg.mxu0
    %v324 = vld [vmem:[%s6] sm:$0x1]
    %v326 = vlaneseq
    %v327 = vshrl.u32 %v326, 7
    %v328 = vsub.s32 0, %v327
    %v329 = vrot.slane %v324, %v328
    %v331 = vadd.f32 %v318, %v329
    %v332 = vadd.f32 %v321, %v329
    %333 = vst [vmem:[#allocation10] sm:$0xff] %v331
    %334 = vst [vmem:[#allocation10 + $0x8] sm:$0xff] %v332
    // Predicated region
    $region46: #{tpu_custom_call.1} parent=1 // pred_check
      _
    $region47: #{tpu_custom_call.1} parent=1 // pred_check_branch
      %336 = sbr.rel (0) target = $region49
    $region48: #{tpu_custom_call.1} parent=1 // pred_region
      %s338 = ssub.s32 256, 256
      %339 = vsyncadd [#allocation4], %s338
      %s340 = sshll.u32 [#allocation10], 4
      %s341 = int_to_ptr.vmem [resolvable:$true] %s340
      %346 = dma.vmem_to_hbm [thread:$0]  %s341, 256, %s7, [#allocation4], 128, 128, 8
    $region49: #{tpu_custom_call.1} parent=1 // pred_fallthru
      _
    // Predicated region
    $region50: #{tpu_custom_call.1} parent=1 // pred_check
      _
    $region51: #{tpu_custom_call.1} parent=1 // pred_check_branch
      %348 = sbr.rel (0) target = $region53
    $region52: #{tpu_custom_call.1} parent=1 // pred_region
      %349 = dma.done [#allocation4], 256
    $region53: #{tpu_custom_call.1} parent=1 // pred_fallthru
      _
    %350 = vsyncpa [#allocation3], 1
    %351 = vsyncpa [#allocation6], 1
    %352 = vsyncpa [#allocation9], 1
    %353 = vsyncpa [#allocation4], 1

</llo_original>
